<compile_context>
chip_gen: v7x
topology: tpu7x:2x2x1
jax: 0.10.0
libtpu: 0.0.40
codegen_flags: <defaults>
</compile_context>

<pallas_src>
import functools

import jax
import jax.numpy as jnp
from jax import lax
from jax.experimental import pallas as pl
from jax.experimental.pallas import tpu as pltpu


# --------------------------- in-kernel helpers ----------------------------- #

def _tap_stack(v, h, w):
    """Stack the 9 shifted 3x3 (pad=1, stride=1) windows along the K dim.

    v: (C, h*w) channel-major, flattened-spatial (lane-dense) activation.
    Returns (9*C, h*w): row t*C + c holds channel c shifted by tap
    t = 3*kh + kw, zero-filled outside the image, so the whole conv becomes a
    single (Cout, 9*C) x (9*C, h*w) MXU dot.
    """
    c, hw = v.shape
    pad = w + 1                                   # max |flat shift|
    zpad = jnp.zeros((c, pad), v.dtype)
    vpad = jnp.concatenate([zpad, v, zpad], axis=1)      # (c, hw + 2w + 2)
    col = lax.broadcasted_iota(jnp.int32, (c, hw), 1) % w
    zero = jnp.zeros((c, hw), v.dtype)
    pieces = []
    for oy in (-1, 0, 1):            # oy = kh - 1
        for ox in (-1, 0, 1):        # ox = kw - 1
            d = oy * w + ox          # flat-index shift
            s = vpad[:, pad + d: pad + d + hw]   # s[p] = v[p+d] (zero filled)
            # Column validity: output column x needs x + ox in [0, w).
            if ox == -1:
                s = jnp.where(col >= 1, s, zero)
            elif ox == 1:
                s = jnp.where(col <= w - 2, s, zero)
            pieces.append(s)
    return jnp.concatenate(pieces, axis=0)               # (9*c, h*w)


def _resblock_kernel(*refs, H, W, Ho, Wo, stride, proj):
    """Fused conv1+bn1+relu -> conv2+bn2 -> +shortcut -> relu for one image."""
    i = 0
    x_ref = refs[i]; i += 1          # (1, Cin, H*W)    f32
    w1_ref = refs[i]; i += 1         # (Cout, 9*Cin)    bf16 (bn1 scale folded)
    s1_ref = refs[i]; i += 1         # (Cout, 1)        f32  (bn1 shift)
    w2_ref = refs[i]; i += 1         # (Cout, 9*Cout)   bf16 (bn2 scale folded)
    s2_ref = refs[i]; i += 1         # (Cout, 1)        f32  (bn2 shift)
    sel_ref = None
    if stride > 1:
        sel_ref = refs[i]; i += 1    # (H*W, Ho*Wo)     bf16 0/1 subsample mat
    if proj:
        wsc_ref = refs[i]; i += 1    # (Cout, Cin)      bf16 (bnsc scale folded)
        ssc_ref = refs[i]; i += 1    # (Cout, 1)        f32  (bnsc shift)
    o_ref = refs[-1]                 # (1, Cout, Ho*Wo) f32

    x = x_ref[0]                     # (Cin, H*W) f32 (also the exact residual)
    xb = x.astype(jnp.bfloat16)

    # conv1 (full resolution) + folded bn1 + relu — one MXU dot, K = 9*Cin.
    p1 = _tap_stack(xb, H, W)                                     # (9Cin, HW)
    y1 = jnp.dot(w1_ref[...], p1, preferred_element_type=jnp.float32)
    y1 = jnp.maximum(y1 + s1_ref[...], 0.0)                       # (Cout, HW)

    # stride-2 subsample via 0/1 selection matmul (exact on bf16 values).
    if stride > 1:
        mid = jnp.dot(y1.astype(jnp.bfloat16), sel_ref[...],
                      preferred_element_type=jnp.float32)
    else:
        mid = y1
    mid_b = mid.astype(jnp.bfloat16)                              # (Cout, HoWo)

    # conv2 + folded bn2 — one MXU dot, K = 9*Cout.
    p2 = _tap_stack(mid_b, Ho, Wo)
    y2 = jnp.dot(w2_ref[...], p2, preferred_element_type=jnp.float32)
    y2 = y2 + s2_ref[...]

    # shortcut
    if proj:                          # fused 1x1 conv + BN projection shortcut
        if stride > 1:
            xsc = jnp.dot(xb, sel_ref[...],
                          preferred_element_type=jnp.float32).astype(jnp.bfloat16)
        else:
            xsc = xb
        y2 = y2 + jnp.dot(wsc_ref[...], xsc,
                          preferred_element_type=jnp.float32) + ssc_ref[...]
    else:                             # identity residual, exact f32
        y2 = y2 + x

    o_ref[0] = jnp.maximum(y2, 0.0).astype(o_ref.dtype)


# ------------------------------ wrappers ----------------------------------- #

def _bn_scale_shift(bn, eps=1e-5):
    gamma, beta, mean, var = bn
    scale = gamma / jnp.sqrt(var + eps)
    return scale, beta - mean * scale


def _fold3x3(w_oihw, scale):
    """(Cout, Cin, 3, 3) -> (Cout, 9*Cin) bf16, BN scale folded, tap-major K."""
    co, ci, kh, kw = w_oihw.shape
    w = jnp.transpose(w_oihw, (0, 2, 3, 1)).reshape(co, kh * kw * ci)
    return (w * scale[:, None]).astype(jnp.bfloat16)


@functools.partial(jax.jit, static_argnums=2)
def residual_block_forward(x_nchw, params, downsample):
    """Pallas-backed ResidualBlock forward (eval-mode BN). NCHW in / NCHW out."""
    stride = 2 if downsample else 1
    N, Cin, H, W = x_nchw.shape
    Cout = params["w1"].shape[0]
    Ho = (H - 1) // stride + 1
    Wo = (W - 1) // stride + 1
    proj = "wsc" in params

    # Free, contiguous reshape: no transpose / pad / phase-slice HBM traffic.
    x_flat = x_nchw.reshape(N, Cin, H * W).astype(jnp.float32)

    s1, b1 = _bn_scale_shift(params["bn1"])
    s2, b2 = _bn_scale_shift(params["bn2"])
    operands = [
        x_flat,
        _fold3x3(params["w1"], s1), b1.reshape(Cout, 1).astype(jnp.float32),
        _fold3x3(params["w2"], s2), b2.reshape(Cout, 1).astype(jnp.float32),
    ]
    in_specs = [
        pl.BlockSpec((1, Cin, H * W), lambda n: (n, 0, 0)),
        pl.BlockSpec((Cout, 9 * Cin), lambda n: (0, 0)),
        pl.BlockSpec((Cout, 1), lambda n: (0, 0)),
        pl.BlockSpec((Cout, 9 * Cout), lambda n: (0, 0)),
        pl.BlockSpec((Cout, 1), lambda n: (0, 0)),
    ]

    if stride > 1:
        # 0/1 subsample matrix: flat(y, x) -> flat(stride*y, stride*x).
        q = jnp.arange(Ho * Wo)
        src = stride * (q // Wo) * W + stride * (q % Wo)
        sel = (jnp.arange(H * W)[:, None] == src[None, :]).astype(jnp.bfloat16)
        operands.append(sel)
        in_specs.append(pl.BlockSpec((H * W, Ho * Wo), lambda n: (0, 0)))

    if proj:
        ssc, bsc = _bn_scale_shift(params["bnsc"])
        wsc = (params["wsc"][:, :, 0, 0] * ssc[:, None]).astype(jnp.bfloat16)
        operands += [wsc, bsc.reshape(Cout, 1).astype(jnp.float32)]
        in_specs += [pl.BlockSpec((Cout, Cin), lambda n: (0, 0)),
                     pl.BlockSpec((Cout, 1), lambda n: (0, 0))]

    kernel = functools.partial(_resblock_kernel, H=H, W=W, Ho=Ho, Wo=Wo,
                               stride=stride, proj=proj)
    out = pl.pallas_call(
        kernel,
        out_shape=jax.ShapeDtypeStruct((N, Cout, Ho * Wo), jnp.float32),
        grid=(N,),
        in_specs=in_specs,
        out_specs=pl.BlockSpec((1, Cout, Ho * Wo), lambda n: (n, 0, 0)),
        compiler_params=pltpu.CompilerParams(
            dimension_semantics=("parallel",),
            vmem_limit_bytes=32 * 1024 * 1024),
    )(*operands)
    return out.reshape(N, Cout, Ho, Wo)          # free contiguous reshape


# ----------------------- deterministic parameter init ---------------------- #

def make_bn_params(key, c):
    kg, kb, km, kv = jax.random.split(key, 4)
    gamma = 1.0 + 0.1 * jax.random.normal(kg, (c,), jnp.float32)
    beta = 0.1 * jax.random.normal(kb, (c,), jnp.float32)
    mean = 0.1 * jax.random.normal(km, (c,), jnp.float32)
    var = jax.random.uniform(kv, (c,), jnp.float32, minval=0.5, maxval=1.5)
    return (gamma, beta, mean, var)


def init_params(key, cin, cout, downsample):
    ks = jax.random.split(key, 6)
    p = {
        "w1": 0.1 * jax.random.normal(ks[0], (cout, cin, 3, 3), jnp.float32),
        "bn1": make_bn_params(ks[1], cout),
        "w2": 0.1 * jax.random.normal(ks[2], (cout, cout, 3, 3), jnp.float32),
        "bn2": make_bn_params(ks[3], cout),
    }
    if downsample or cin != cout:
        p["wsc"] = 0.1 * jax.random.normal(ks[4], (cout, cin, 1, 1), jnp.float32)
        p["bnsc"] = make_bn_params(ks[5], cout)
    return p


# ------------------------------ reference ---------------------------------- #

def reference_forward(x, params, downsample):
    stride = 2 if downsample else 1

    def conv(x, w, s, p):
        return jax.lax.conv_general_dilated(
            x, w, (s, s), [(p, p), (p, p)],
            dimension_numbers=("NCHW", "OIHW", "NCHW"))

    def bn(x, bp):
        g, b, m, v = bp
        inv = g / jnp.sqrt(v + 1e-5)
        return x * inv[None, :, None, None] + (b - m * inv)[None, :, None, None]

    out = jax.nn.relu(bn(conv(x, params["w1"], stride, 1), params["bn1"]))
    out = bn(conv(out, params["w2"], 1, 1), params["bn2"])
    if "wsc" in params:
        res = bn(conv(x, params["wsc"], stride, 0), params["bnsc"])
    else:
        res = x
    return jax.nn.relu(out + res)


# --------------------------------- main ------------------------------------ #

if __name__ == "__main__":
    key = jax.random.PRNGKey(0)
    kx, kp1, kp2 = jax.random.split(key, 3)
    x = jax.random.normal(kx, (2, 4, 16, 16), jnp.float32)

    # bf16 activations/weights through the MXU (f32 accumulation) -> loose tol.
    TOL = 5e-2

    # Config 1: in_channels == out_channels, no downsample (identity shortcut)
    params1 = init_params(kp1, 4, 4, False)
    y1 = jax.block_until_ready(residual_block_forward(x, params1, False))
    r1 = reference_forward(x, params1, False)
    assert y1.shape == (2, 4, 16, 16)
    assert jnp.allclose(y1, r1, atol=TOL, rtol=TOL), float(jnp.max(jnp.abs(y1 - r1)))

    # Config 2: downsample with fused 1x1-conv + BN projection shortcut
    params2 = init_params(kp2, 4, 8, True)
    y2 = jax.block_until_ready(residual_block_forward(x, params2, True))
    r2 = reference_forward(x, params2, True)
    assert y2.shape == (2, 8, 8, 8)
    assert jnp.allclose(y2, r2, atol=TOL, rtol=TOL), float(jnp.max(jnp.abs(y2 - r2)))

    print("KERNEL_OK")
</pallas_src>

<mosaic_0001>
module attributes {stable_mosaic.version = 11 : i64} {
  func.func @_resblock_kernel(%arg0: i32, %arg1: memref<1x4x256xf32, #tpu.memory_space<vmem>>, %arg2: memref<4x36xbf16, #tpu.memory_space<vmem>>, %arg3: memref<4x1xf32, #tpu.memory_space<vmem>>, %arg4: memref<4x36xbf16, #tpu.memory_space<vmem>>, %arg5: memref<4x1xf32, #tpu.memory_space<vmem>>, %arg6: memref<1x4x256xf32, #tpu.memory_space<vmem>>) attributes {dimension_semantics = [#tpu.dimension_semantics<parallel>], iteration_bounds = array<i64: 2>, scalar_prefetch = 0 : i64, scratch_operands = 0 : i64, tpu.core_type = #tpu.core_type<tc>, window_params = [{transform_indices = @transform_0, window_bounds = array<i64: 1, 4, 256>}, {pipeline_mode = #tpu.pipeline_mode<synchronous>, transform_indices = @transform_1, window_bounds = array<i64: 4, 36>}, {pipeline_mode = #tpu.pipeline_mode<synchronous>, transform_indices = @transform_2, window_bounds = array<i64: 4, 1>}, {pipeline_mode = #tpu.pipeline_mode<synchronous>, transform_indices = @transform_3, window_bounds = array<i64: 4, 36>}, {pipeline_mode = #tpu.pipeline_mode<synchronous>, transform_indices = @transform_4, window_bounds = array<i64: 4, 1>}, {transform_indices = @transform_5, window_bounds = array<i64: 1, 4, 256>}]} {
    %c0 = arith.constant 0 : index
    %c0_0 = arith.constant 0 : index
    %c0_1 = arith.constant 0 : index
    %0 = vector.load %arg1[%c0, %c0_0, %c0_1] : memref<1x4x256xf32, #tpu.memory_space<vmem>>, vector<1x4x256xf32>
    %1 = vector.shape_cast %0 : vector<1x4x256xf32> to vector<4x256xf32>
    %2 = arith.truncf %1 : vector<4x256xf32> to vector<4x256xbf16>
    %cst = arith.constant 0.000000e+00 : bf16
    %3 = vector.broadcast %cst : bf16 to vector<4x17xbf16>
    %4 = tpu.concatenate %3, %2, %3 in 1 : vector<4x17xbf16>, vector<4x256xbf16>, vector<4x17xbf16> -> vector<4x290xbf16>
    %5 = tpu.iota {dimensions = array<i32: 1>} : vector<4x256xi32>
    %c16_i32 = arith.constant 16 : i32
    %c0_i32 = arith.constant 0 : i32
    %6 = arith.cmpi eq, %c16_i32, %c0_i32 : i32
    %c1_i32 = arith.constant 1 : i32
    %7 = arith.select %6, %c1_i32, %c16_i32 : i32
    %8 = vector.broadcast %7 : i32 to vector<4x256xi32>
    %9 = arith.remsi %5, %8 : vector<4x256xi32>
    %c0_i32_2 = arith.constant 0 : i32
    %10 = vector.broadcast %c0_i32_2 : i32 to vector<4x256xi32>
    %11 = arith.cmpi ne, %9, %10 : vector<4x256xi32>
    %c0_i32_3 = arith.constant 0 : i32
    %12 = vector.broadcast %c0_i32_3 : i32 to vector<4x256xi32>
    %13 = arith.cmpi slt, %9, %12 : vector<4x256xi32>
    %c0_i32_4 = arith.constant 0 : i32
    %14 = arith.cmpi slt, %7, %c0_i32_4 : i32
    %15 = vector.broadcast %14 : i1 to vector<4x256xi1>
    %16 = vector.broadcast %15 : vector<4x256xi1> to vector<4x256xi1>
    %17 = arith.xori %13, %16 : vector<4x256xi1>
    %18 = arith.andi %17, %11 : vector<4x256xi1>
    %19 = vector.broadcast %7 : i32 to vector<4x256xi32>
    %20 = arith.addi %9, %19 : vector<4x256xi32>
    %21 = arith.select %18, %20, %9 : vector<4x256xi1>, vector<4x256xi32>
    %cst_5 = arith.constant 0.000000e+00 : bf16
    %22 = vector.broadcast %cst_5 : bf16 to vector<4x256xbf16>
    %23 = vector.extract_strided_slice %4 {offsets = [0, 0], sizes = [4, 256], strides = [1, 1]} : vector<4x290xbf16> to vector<4x256xbf16>
    %c1_i32_6 = arith.constant 1 : i32
    %24 = vector.broadcast %c1_i32_6 : i32 to vector<4x256xi32>
    %25 = arith.cmpi sge, %21, %24 : vector<4x256xi32>
    %26 = arith.select %25, %23, %22 : vector<4x256xi1>, vector<4x256xbf16>
    %27 = vector.extract_strided_slice %4 {offsets = [0, 1], sizes = [4, 256], strides = [1, 1]} : vector<4x290xbf16> to vector<4x256xbf16>
    %28 = vector.extract_strided_slice %4 {offsets = [0, 2], sizes = [4, 256], strides = [1, 1]} : vector<4x290xbf16> to vector<4x256xbf16>
    %c14_i32 = arith.constant 14 : i32
    %29 = vector.broadcast %c14_i32 : i32 to vector<4x256xi32>
    %30 = arith.cmpi sle, %21, %29 : vector<4x256xi32>
    %31 = arith.select %30, %28, %22 : vector<4x256xi1>, vector<4x256xbf16>
    %32 = vector.extract_strided_slice %4 {offsets = [0, 16], sizes = [4, 256], strides = [1, 1]} : vector<4x290xbf16> to vector<4x256xbf16>
    %c1_i32_7 = arith.constant 1 : i32
    %33 = vector.broadcast %c1_i32_7 : i32 to vector<4x256xi32>
    %34 = arith.cmpi sge, %21, %33 : vector<4x256xi32>
    %35 = arith.select %34, %32, %22 : vector<4x256xi1>, vector<4x256xbf16>
    %36 = vector.extract_strided_slice %4 {offsets = [0, 17], sizes = [4, 256], strides = [1, 1]} : vector<4x290xbf16> to vector<4x256xbf16>
    %37 = vector.extract_strided_slice %4 {offsets = [0, 18], sizes = [4, 256], strides = [1, 1]} : vector<4x290xbf16> to vector<4x256xbf16>
    %c14_i32_8 = arith.constant 14 : i32
    %38 = vector.broadcast %c14_i32_8 : i32 to vector<4x256xi32>
    %39 = arith.cmpi sle, %21, %38 : vector<4x256xi32>
    %40 = arith.select %39, %37, %22 : vector<4x256xi1>, vector<4x256xbf16>
    %41 = vector.extract_strided_slice %4 {offsets = [0, 32], sizes = [4, 256], strides = [1, 1]} : vector<4x290xbf16> to vector<4x256xbf16>
    %c1_i32_9 = arith.constant 1 : i32
    %42 = vector.broadcast %c1_i32_9 : i32 to vector<4x256xi32>
    %43 = arith.cmpi sge, %21, %42 : vector<4x256xi32>
    %44 = arith.select %43, %41, %22 : vector<4x256xi1>, vector<4x256xbf16>
    %45 = vector.extract_strided_slice %4 {offsets = [0, 33], sizes = [4, 256], strides = [1, 1]} : vector<4x290xbf16> to vector<4x256xbf16>
    %46 = vector.extract_strided_slice %4 {offsets = [0, 34], sizes = [4, 256], strides = [1, 1]} : vector<4x290xbf16> to vector<4x256xbf16>
    %c14_i32_10 = arith.constant 14 : i32
    %47 = vector.broadcast %c14_i32_10 : i32 to vector<4x256xi32>
    %48 = arith.cmpi sle, %21, %47 : vector<4x256xi32>
    %49 = arith.select %48, %46, %22 : vector<4x256xi1>, vector<4x256xbf16>
    %50 = tpu.concatenate %26, %27, %31, %35, %36, %40, %44, %45, %49 in 0 : vector<4x256xbf16>, vector<4x256xbf16>, vector<4x256xbf16>, vector<4x256xbf16>, vector<4x256xbf16>, vector<4x256xbf16>, vector<4x256xbf16>, vector<4x256xbf16>, vector<4x256xbf16> -> vector<36x256xbf16>
    %c0_11 = arith.constant 0 : index
    %c0_12 = arith.constant 0 : index
    %51 = vector.load %arg2[%c0_11, %c0_12] : memref<4x36xbf16, #tpu.memory_space<vmem>>, vector<4x36xbf16>
    %cst_13 = arith.constant dense<0.000000e+00> : vector<4x256xf32>
    %52 = tpu.matmul %51, %50, %cst_13 {dimension_numbers = #tpu.dot_dimension_numbers<[1], [0], [0], [1], [0, 0, 1, 1], [], []>} : vector<4x36xbf16>, vector<36x256xbf16>, vector<4x256xf32> -> vector<4x256xf32>
    %c0_14 = arith.constant 0 : index
    %c0_15 = arith.constant 0 : index
    %53 = vector.load %arg3[%c0_14, %c0_15] : memref<4x1xf32, #tpu.memory_space<vmem>>, vector<4x1xf32>
    %54 = vector.broadcast %53 : vector<4x1xf32> to vector<4x256xf32>
    %55 = arith.addf %52, %54 : vector<4x256xf32>
    %cst_16 = arith.constant 0.000000e+00 : f32
    %56 = vector.broadcast %cst_16 : f32 to vector<4x256xf32>
    %57 = arith.maximumf %55, %56 : vector<4x256xf32>
    %58 = arith.truncf %57 : vector<4x256xf32> to vector<4x256xbf16>
    %cst_17 = arith.constant 0.000000e+00 : bf16
    %59 = vector.broadcast %cst_17 : bf16 to vector<4x17xbf16>
    %60 = tpu.concatenate %59, %58, %59 in 1 : vector<4x17xbf16>, vector<4x256xbf16>, vector<4x17xbf16> -> vector<4x290xbf16>
    %61 = tpu.iota {dimensions = array<i32: 1>} : vector<4x256xi32>
    %c16_i32_18 = arith.constant 16 : i32
    %c0_i32_19 = arith.constant 0 : i32
    %62 = arith.cmpi eq, %c16_i32_18, %c0_i32_19 : i32
    %c1_i32_20 = arith.constant 1 : i32
    %63 = arith.select %62, %c1_i32_20, %c16_i32_18 : i32
    %64 = vector.broadcast %63 : i32 to vector<4x256xi32>
    %65 = arith.remsi %61, %64 : vector<4x256xi32>
    %c0_i32_21 = arith.constant 0 : i32
    %66 = vector.broadcast %c0_i32_21 : i32 to vector<4x256xi32>
    %67 = arith.cmpi ne, %65, %66 : vector<4x256xi32>
    %c0_i32_22 = arith.constant 0 : i32
    %68 = vector.broadcast %c0_i32_22 : i32 to vector<4x256xi32>
    %69 = arith.cmpi slt, %65, %68 : vector<4x256xi32>
    %c0_i32_23 = arith.constant 0 : i32
    %70 = arith.cmpi slt, %63, %c0_i32_23 : i32
    %71 = vector.broadcast %70 : i1 to vector<4x256xi1>
    %72 = vector.broadcast %71 : vector<4x256xi1> to vector<4x256xi1>
    %73 = arith.xori %69, %72 : vector<4x256xi1>
    %74 = arith.andi %73, %67 : vector<4x256xi1>
    %75 = vector.broadcast %63 : i32 to vector<4x256xi32>
    %76 = arith.addi %65, %75 : vector<4x256xi32>
    %77 = arith.select %74, %76, %65 : vector<4x256xi1>, vector<4x256xi32>
    %cst_24 = arith.constant 0.000000e+00 : bf16
    %78 = vector.broadcast %cst_24 : bf16 to vector<4x256xbf16>
    %79 = vector.extract_strided_slice %60 {offsets = [0, 0], sizes = [4, 256], strides = [1, 1]} : vector<4x290xbf16> to vector<4x256xbf16>
    %c1_i32_25 = arith.constant 1 : i32
    %80 = vector.broadcast %c1_i32_25 : i32 to vector<4x256xi32>
    %81 = arith.cmpi sge, %77, %80 : vector<4x256xi32>
    %82 = arith.select %81, %79, %78 : vector<4x256xi1>, vector<4x256xbf16>
    %83 = vector.extract_strided_slice %60 {offsets = [0, 1], sizes = [4, 256], strides = [1, 1]} : vector<4x290xbf16> to vector<4x256xbf16>
    %84 = vector.extract_strided_slice %60 {offsets = [0, 2], sizes = [4, 256], strides = [1, 1]} : vector<4x290xbf16> to vector<4x256xbf16>
    %c14_i32_26 = arith.constant 14 : i32
    %85 = vector.broadcast %c14_i32_26 : i32 to vector<4x256xi32>
    %86 = arith.cmpi sle, %77, %85 : vector<4x256xi32>
    %87 = arith.select %86, %84, %78 : vector<4x256xi1>, vector<4x256xbf16>
    %88 = vector.extract_strided_slice %60 {offsets = [0, 16], sizes = [4, 256], strides = [1, 1]} : vector<4x290xbf16> to vector<4x256xbf16>
    %c1_i32_27 = arith.constant 1 : i32
    %89 = vector.broadcast %c1_i32_27 : i32 to vector<4x256xi32>
    %90 = arith.cmpi sge, %77, %89 : vector<4x256xi32>
    %91 = arith.select %90, %88, %78 : vector<4x256xi1>, vector<4x256xbf16>
    %92 = vector.extract_strided_slice %60 {offsets = [0, 17], sizes = [4, 256], strides = [1, 1]} : vector<4x290xbf16> to vector<4x256xbf16>
    %93 = vector.extract_strided_slice %60 {offsets = [0, 18], sizes = [4, 256], strides = [1, 1]} : vector<4x290xbf16> to vector<4x256xbf16>
    %c14_i32_28 = arith.constant 14 : i32
    %94 = vector.broadcast %c14_i32_28 : i32 to vector<4x256xi32>
    %95 = arith.cmpi sle, %77, %94 : vector<4x256xi32>
    %96 = arith.select %95, %93, %78 : vector<4x256xi1>, vector<4x256xbf16>
    %97 = vector.extract_strided_slice %60 {offsets = [0, 32], sizes = [4, 256], strides = [1, 1]} : vector<4x290xbf16> to vector<4x256xbf16>
    %c1_i32_29 = arith.constant 1 : i32
    %98 = vector.broadcast %c1_i32_29 : i32 to vector<4x256xi32>
    %99 = arith.cmpi sge, %77, %98 : vector<4x256xi32>
    %100 = arith.select %99, %97, %78 : vector<4x256xi1>, vector<4x256xbf16>
    %101 = vector.extract_strided_slice %60 {offsets = [0, 33], sizes = [4, 256], strides = [1, 1]} : vector<4x290xbf16> to vector<4x256xbf16>
    %102 = vector.extract_strided_slice %60 {offsets = [0, 34], sizes = [4, 256], strides = [1, 1]} : vector<4x290xbf16> to vector<4x256xbf16>
    %c14_i32_30 = arith.constant 14 : i32
    %103 = vector.broadcast %c14_i32_30 : i32 to vector<4x256xi32>
    %104 = arith.cmpi sle, %77, %103 : vector<4x256xi32>
    %105 = arith.select %104, %102, %78 : vector<4x256xi1>, vector<4x256xbf16>
    %106 = tpu.concatenate %82, %83, %87, %91, %92, %96, %100, %101, %105 in 0 : vector<4x256xbf16>, vector<4x256xbf16>, vector<4x256xbf16>, vector<4x256xbf16>, vector<4x256xbf16>, vector<4x256xbf16>, vector<4x256xbf16>, vector<4x256xbf16>, vector<4x256xbf16> -> vector<36x256xbf16>
    %c0_31 = arith.constant 0 : index
    %c0_32 = arith.constant 0 : index
    %107 = vector.load %arg4[%c0_31, %c0_32] : memref<4x36xbf16, #tpu.memory_space<vmem>>, vector<4x36xbf16>
    %cst_33 = arith.constant dense<0.000000e+00> : vector<4x256xf32>
    %108 = tpu.matmul %107, %106, %cst_33 {dimension_numbers = #tpu.dot_dimension_numbers<[1], [0], [0], [1], [0, 0, 1, 1], [], []>} : vector<4x36xbf16>, vector<36x256xbf16>, vector<4x256xf32> -> vector<4x256xf32>
    %c0_34 = arith.constant 0 : index
    %c0_35 = arith.constant 0 : index
    %109 = vector.load %arg5[%c0_34, %c0_35] : memref<4x1xf32, #tpu.memory_space<vmem>>, vector<4x1xf32>
    %110 = vector.broadcast %109 : vector<4x1xf32> to vector<4x256xf32>
    %111 = arith.addf %108, %110 : vector<4x256xf32>
    %112 = arith.addf %111, %1 : vector<4x256xf32>
    %cst_36 = arith.constant 0.000000e+00 : f32
    %113 = vector.broadcast %cst_36 : f32 to vector<4x256xf32>
    %114 = arith.maximumf %112, %113 : vector<4x256xf32>
    %c0_37 = arith.constant 0 : index
    %c0_38 = arith.constant 0 : index
    %c0_39 = arith.constant 0 : index
    %115 = vector.load %arg6[%c0_37, %c0_38, %c0_39] : memref<1x4x256xf32, #tpu.memory_space<vmem>>, vector<1x4x256xf32>
    %116 = vector.shape_cast %115 : vector<1x4x256xf32> to vector<4x256xf32>
    %117 = vector.shape_cast %114 : vector<4x256xf32> to vector<1x4x256xf32>
    tpu.vector_store %arg6[%c0_37, %c0_38, %c0_39], %117 {strides = array<i32>} : memref<1x4x256xf32, #tpu.memory_space<vmem>>, vector<1x4x256xf32>,
    return
  }
  func.func @transform_0(%arg0: i32) -> (i32, i32, i32) {
    %c0_i32 = arith.constant 0 : i32
    %c0_i32_0 = arith.constant 0 : i32
    %c0_i32_1 = arith.constant 0 : i32
    return %arg0, %c0_i32, %c0_i32_0 : i32, i32, i32
  }
  func.func @transform_1(%arg0: i32) -> (i32, i32) {
    %c0_i32 = arith.constant 0 : i32
    %c0_i32_0 = arith.constant 0 : i32
    %c0_i32_1 = arith.constant 0 : i32
    return %c0_i32, %c0_i32_0 : i32, i32
  }
  func.func @transform_2(%arg0: i32) -> (i32, i32) {
    %c0_i32 = arith.constant 0 : i32
    %c0_i32_0 = arith.constant 0 : i32
    %c0_i32_1 = arith.constant 0 : i32
    return %c0_i32, %c0_i32_0 : i32, i32
  }
  func.func @transform_3(%arg0: i32) -> (i32, i32) {
    %c0_i32 = arith.constant 0 : i32
    %c0_i32_0 = arith.constant 0 : i32
    %c0_i32_1 = arith.constant 0 : i32
    return %c0_i32, %c0_i32_0 : i32, i32
  }
  func.func @transform_4(%arg0: i32) -> (i32, i32) {
    %c0_i32 = arith.constant 0 : i32
    %c0_i32_0 = arith.constant 0 : i32
    %c0_i32_1 = arith.constant 0 : i32
    return %c0_i32, %c0_i32_0 : i32, i32
  }
  func.func @transform_5(%arg0: i32) -> (i32, i32, i32) {
    %c0_i32 = arith.constant 0 : i32
    %c0_i32_0 = arith.constant 0 : i32
    %c0_i32_1 = arith.constant 0 : i32
    return %arg0, %c0_i32, %c0_i32_0 : i32, i32, i32
  }
}

</mosaic_0001>

<llo_original>
// kernel: residual_block_forward.1
$region0: #{residual_block_forward.1}
  #allocation0 [shape = 'u32[]', space=smem, size = 0x4, offset = 0x4, fixed_abs, tag = 'smem constant byte address 0x4 - core index']
  #allocation1 [shape = 'u32[144,128]{1,0:T(1,128)}', space=vmem, size = 0x12000, scoped, tag = 'internal scratch']
  %s0 = inlined_call_operand.vmem [shape: f32[2,4,256], index: 0, kind: input, shape index: {}]
  %s1 = inlined_call_operand.vmem [shape: bf16[4,36], index: 1, kind: input, shape index: {}]
  %s2 = inlined_call_operand.vmem [shape: f32[4,1], index: 2, kind: input, shape index: {}]
  %s3 = inlined_call_operand.vmem [shape: bf16[4,36], index: 3, kind: input, shape index: {}]
  %s4 = inlined_call_operand.vmem [shape: f32[4,1], index: 4, kind: input, shape index: {}]
  %s5 = inlined_call_operand.vmem [shape: f32[2,4,256], index: 5, kind: output, shape index: {}]
  %s6 = sld [smem:[#allocation0]]
  $region53: #{residual_block_forward.1} parent=0
    _
  %s8 = ssub.s32 1, %s6
  %s9 = scalar_select 0, %s8, %s6
  loop: start=0, step=1, limit=4
  $region2: #{residual_block_forward.1} parent=0 // loop_pre_header
    _
  $region3: #{residual_block_forward.1} parent=0 // loop_header
    %s11 = sphi 0, %s15
    %p12 = scmp.ge.s32.totalorder %s11, 4
    %s21 = sphi 0, %s23
    %s24 = sphi 0, %s21
    %s25 = sphi 0, %s24
    %s41 = sphi 0, %s25
    %s45 = sphi 0, %s45
    %s47 = sphi 0, %s45
    %s48 = sphi 0, %s47
    %s62 = sphi 0, %s48
    %s66 = sphi 0, %s66
    %s68 = sphi 0, %s66
    %s69 = sphi 0, %s68
    %s83 = sphi 0, %s69
    %s87 = sphi 0, %s87
    %s89 = sphi 0, %s87
    %s90 = sphi 0, %s89
    %s104 = sphi 0, %s90
    %s108 = sphi 0, %s108
    %s110 = sphi 0, %s108
    %s111 = sphi 0, %s110
    %s125 = sphi 0, %s111
    %s131 = sphi 0, %s133
    %s134 = sphi 0, %s131
    %s135 = sphi 0, %s134
    %s151 = sphi 0, %s135
  $region4: #{residual_block_forward.1} parent=0 // loop_header_branch
    %14 = sbr.rel (%p12) target = $region8
  $region5: #{residual_block_forward.1} parent=0 // loop_body
    %s16 = ssub.s32 %s11, 1
    %s17 = ssub.s32 %s11, 2
    %s18 = sadd.s32 %s11, 1
    %s19 = ssub.s32 %s11, %s18
    %p20 = scmp.eq.s32.totalorder %s19, 0
    %s22 = sadd.s32 %s21, 1
    %s23 = scalar_select %p20, %s21, %s22
    %p26 = pneg %p20
    %p27 = scmp.eq.s32.totalorder %s11, 1
    %p28 = por %p26, %p27
    %p29 = scmp.ne.s32.totalorder %s21, %s24
    %p30 = scmp.eq.s32.totalorder %s11, 0
    %p31 = por %p29, %p30
    %p32 = scmp.ne.s32.totalorder %s21, %s24
    %p33 = scmp.eq.s32.totalorder %s16, 1
    %p34 = por %p32, %p33
    %p35 = scmp.ne.s32.totalorder %s24, %s25
    %p36 = scmp.eq.s32.totalorder %s16, 0
    %p37 = por %p35, %p36
    %p38 = scmp.ne.s32.totalorder %s24, %s25
    %p39 = scmp.eq.s32.totalorder %s17, 1
    %p40 = por %p38, %p39
    %p42 = scmp.ne.s32.totalorder %s25, %s41
    %p43 = scmp.eq.s32.totalorder %s17, 0
    %p44 = por %p42, %p43
    %s46 = sadd.s32 %s45, 1
    %p49 = scmp.eq.s32.totalorder %s11, 1
    %p50 = scmp.ne.s32.totalorder %s45, %s47
    %p51 = scmp.eq.s32.totalorder %s11, 0
    %p52 = por %p50, %p51
    %p53 = scmp.ne.s32.totalorder %s45, %s47
    %p54 = scmp.eq.s32.totalorder %s16, 1
    %p55 = por %p53, %p54
    %p56 = scmp.ne.s32.totalorder %s47, %s48
    %p57 = scmp.eq.s32.totalorder %s16, 0
    %p58 = por %p56, %p57
    %p59 = scmp.ne.s32.totalorder %s47, %s48
    %p60 = scmp.eq.s32.totalorder %s17, 1
    %p61 = por %p59, %p60
    %p63 = scmp.ne.s32.totalorder %s48, %s62
    %p64 = scmp.eq.s32.totalorder %s17, 0
    %p65 = por %p63, %p64
    %s67 = sadd.s32 %s66, 1
    %p70 = scmp.eq.s32.totalorder %s11, 1
    %p71 = scmp.ne.s32.totalorder %s66, %s68
    %p72 = scmp.eq.s32.totalorder %s11, 0
    %p73 = por %p71, %p72
    %p74 = scmp.ne.s32.totalorder %s66, %s68
    %p75 = scmp.eq.s32.totalorder %s16, 1
    %p76 = por %p74, %p75
    %p77 = scmp.ne.s32.totalorder %s68, %s69
    %p78 = scmp.eq.s32.totalorder %s16, 0
    %p79 = por %p77, %p78
    %p80 = scmp.ne.s32.totalorder %s68, %s69
    %p81 = scmp.eq.s32.totalorder %s17, 1
    %p82 = por %p80, %p81
    %p84 = scmp.ne.s32.totalorder %s69, %s83
    %p85 = scmp.eq.s32.totalorder %s17, 0
    %p86 = por %p84, %p85
    %s88 = sadd.s32 %s87, 1
    %p91 = scmp.eq.s32.totalorder %s11, 1
    %p92 = scmp.ne.s32.totalorder %s87, %s89
    %p93 = scmp.eq.s32.totalorder %s11, 0
    %p94 = por %p92, %p93
    %p95 = scmp.ne.s32.totalorder %s87, %s89
    %p96 = scmp.eq.s32.totalorder %s16, 1
    %p97 = por %p95, %p96
    %p98 = scmp.ne.s32.totalorder %s89, %s90
    %p99 = scmp.eq.s32.totalorder %s16, 0
    %p100 = por %p98, %p99
    %p101 = scmp.ne.s32.totalorder %s89, %s90
    %p102 = scmp.eq.s32.totalorder %s17, 1
    %p103 = por %p101, %p102
    %p105 = scmp.ne.s32.totalorder %s90, %s104
    %p106 = scmp.eq.s32.totalorder %s17, 0
    %p107 = por %p105, %p106
    %s109 = sadd.s32 %s108, 1
    %p112 = scmp.eq.s32.totalorder %s11, 1
    %p113 = scmp.ne.s32.totalorder %s108, %s110
    %p114 = scmp.eq.s32.totalorder %s11, 0
    %p115 = por %p113, %p114
    %p116 = scmp.ne.s32.totalorder %s108, %s110
    %p117 = scmp.eq.s32.totalorder %s16, 1
    %p118 = por %p116, %p117
    %p119 = scmp.ne.s32.totalorder %s110, %s111
    %p120 = scmp.eq.s32.totalorder %s16, 0
    %p121 = por %p119, %p120
    %p122 = scmp.ne.s32.totalorder %s110, %s111
    %p123 = scmp.eq.s32.totalorder %s17, 1
    %p124 = por %p122, %p123
    %p126 = scmp.ne.s32.totalorder %s111, %s125
    %p127 = scmp.eq.s32.totalorder %s17, 0
    %p128 = por %p126, %p127
    %s129 = ssub.s32 %s11, %s18
    %p130 = scmp.eq.s32.totalorder %s129, 0
    %s132 = sadd.s32 %s131, 1
    %s133 = scalar_select %p130, %s131, %s132
    %p136 = pneg %p130
    %p137 = scmp.eq.s32.totalorder %s11, 1
    %p138 = por %p136, %p137
    %p139 = scmp.ne.s32.totalorder %s131, %s134
    %p140 = scmp.eq.s32.totalorder %s11, 0
    %p141 = por %p139, %p140
    %p142 = scmp.ne.s32.totalorder %s131, %s134
    %p143 = scmp.eq.s32.totalorder %s16, 1
    %p144 = por %p142, %p143
    %p145 = scmp.ne.s32.totalorder %s134, %s135
    %p146 = scmp.eq.s32.totalorder %s16, 0
    %p147 = por %p145, %p146
    %p148 = scmp.ne.s32.totalorder %s134, %s135
    %p149 = scmp.eq.s32.totalorder %s17, 1
    %p150 = por %p148, %p149
    %p152 = scmp.ne.s32.totalorder %s135, %s151
    %p153 = scmp.eq.s32.totalorder %s17, 0
    %p154 = por %p152, %p153
    %p155 = scmp.le.s32.totalorder 1, %s11
    %p156 = scmp.lt.s32.totalorder %s11, 3
    %p157 = pnand %p155, %p156
    %p158 = pneg %p157
    // Predicated region
    $region9: #{residual_block_forward.1} parent=5 // pred_check
      _
    $region10: #{residual_block_forward.1} parent=5 // pred_check_branch
      %160 = sbr.rel (%p157) target = $region12
    $region11: #{residual_block_forward.1} parent=5 // pred_region
      %s161 = ssub.s32 %s11, 1
      // Predicated region
      $region13: #{residual_block_forward.1} parent=11 // pred_check
        %p162 = pneg %p58
      $region14: #{residual_block_forward.1} parent=11 // pred_check_branch
        %164 = sbr.rel (%p162) target = $region16
      $region15: #{residual_block_forward.1} parent=11 // pred_region
        _
      $region16: #{residual_block_forward.1} parent=11 // pred_fallthru
        _
      // Predicated region
      $region17: #{residual_block_forward.1} parent=11 // pred_check
        %p165 = pneg %p79
      $region18: #{residual_block_forward.1} parent=11 // pred_check_branch
        %167 = sbr.rel (%p165) target = $region20
      $region19: #{residual_block_forward.1} parent=11 // pred_region
        _
      $region20: #{residual_block_forward.1} parent=11 // pred_fallthru
        _
      // Predicated region
      $region21: #{residual_block_forward.1} parent=11 // pred_check
        %p168 = pneg %p100
      $region22: #{residual_block_forward.1} parent=11 // pred_check_branch
        %170 = sbr.rel (%p168) target = $region24
      $region23: #{residual_block_forward.1} parent=11 // pred_region
        _
      $region24: #{residual_block_forward.1} parent=11 // pred_fallthru
        _
      // Predicated region
      $region25: #{residual_block_forward.1} parent=11 // pred_check
        %p171 = pneg %p121
      $region26: #{residual_block_forward.1} parent=11 // pred_check_branch
        %173 = sbr.rel (%p171) target = $region28
      $region27: #{residual_block_forward.1} parent=11 // pred_region
        _
      $region28: #{residual_block_forward.1} parent=11 // pred_fallthru
        _
    $region12: #{residual_block_forward.1} parent=5 // pred_fallthru
      _
    %p174 = scmp.lt.s32.totalorder %s11, 2
    // Predicated region
    $region29: #{residual_block_forward.1} parent=5 // pred_check
      %p175 = pneg %p174
    $region30: #{residual_block_forward.1} parent=5 // pred_check_branch
      %177 = sbr.rel (%p175) target = $region32
    $region31: #{residual_block_forward.1} parent=5 // pred_region
      // Predicated region
      $region33: #{residual_block_forward.1} parent=31 // pred_check
        %p178 = pneg %p31
      $region34: #{residual_block_forward.1} parent=31 // pred_check_branch
        %180 = sbr.rel (%p178) target = $region36
      $region35: #{residual_block_forward.1} parent=31 // pred_region
        %p181 = scmp.lt.s32.totalorder %s11, 1
        %s182 = scalar_select %p181, %s11, 1
        %s183 = smul.addr %s182, 2
        %s184 = smul.addr %s183, 4
        %s185 = scalar_lea.vmem %s0, %s184
      $region36: #{residual_block_forward.1} parent=31 // pred_fallthru
        _
    $region32: #{residual_block_forward.1} parent=5 // pred_fallthru
      _
    %p186 = scmp.le.s32.totalorder 1, %s11
    %p187 = scmp.lt.s32.totalorder %s11, 3
    %p188 = pnand %p186, %p187
    %p189 = pneg %p188
    // Predicated region
    $region37: #{residual_block_forward.1} parent=5 // pred_check
      _
    $region38: #{residual_block_forward.1} parent=5 // pred_check_branch
      %191 = sbr.rel (%p188) target = $region40
    $region39: #{residual_block_forward.1} parent=5 // pred_region
      %s192 = ssub.s32 %s11, 1
      %p193 = scmp.lt.s32.totalorder %s16, 1
      %s194 = scalar_select %p193, %s16, 1
      %s195 = smul.addr %s194, 2
      %s196 = smul.addr %s195, 4
      %s197 = scalar_lea.vmem %s0, %s196
      %p198 = pneg %p37
      %p199 = pneg %p34
      %p200 = pneg %p58
      %p201 = pneg %p55
      %p202 = pneg %p79
      %p203 = pneg %p76
      %p204 = pneg %p100
      %p205 = pneg %p97
      %p206 = pneg %p121
      %p207 = pneg %p118
      %p208 = pneg %p147
      %p209 = pneg %p144
      %p210 = scmp.lt.s32.totalorder %s16, 1
      %s211 = scalar_select %p210, %s16, 1
      %s212 = smul.addr %s211, 2
      %s213 = smul.addr %s212, 4
      %s214 = scalar_lea.vmem %s5, %s213
      %p215 = scmp.lt.s32.totalorder %s16, 1
      %s216 = scalar_select %p215, %s16, 1
      %s217 = smul.addr %s216, 2
      %s218 = smul.addr %s217, 4
      %s219 = scalar_lea.vmem %s0, %s218
      %p220 = scmp.lt.s32.totalorder %s16, 1
      %s221 = scalar_select %p220, %s16, 1
      %s222 = smul.addr %s221, 2
      %s223 = smul.addr %s222, 4
      %s224 = scalar_lea.vmem %s5, %s223
      %v228 = vld [vmem:[%s219] sm:$0xff]
      %v230 = vcombine.high %v228, %v228
      %v232 = vpack.c.bf16 %v228, %v228
      %v233 = vpack.c.bf16 %v230, %v230
      %236 = vrot.lane.b32.xlu0 %v232, 17
      %v237 = vpop.permute.xlu0 %236
      %238 = vrot.lane.b32.xlu0 %v233, 17
      %v239 = vpop.permute.xlu0 %238
      %vm240 = vcmask 138240
      %v241 = vsel %vm240, %v237, %v239
      %vm243 = vcmask 138240
      %v246 = vsel %vm243, 0, %v237
      %v249 = vsel %vm243, %v239, 0
      %v251 = vlaneseq
      %v252 = vand.u32 %v251, 127
      %v253 = vadd.s32 %v252, 128
      %vm254 = vcmp.lt.s32.totalorder %v252, 0
      %v255 = vsub.s32 0, %v252
      %v256 = vsel %vm254, %v255, %v252
      %v257 = vshrl.u32 %v256, 4
      %v258 = vand.u32 %v256, 15
      %v259 = vsub.s32 0, %v258
      %v260 = vsel %vm254, %v259, %v258
      %vm261 = vcmp.lt.s32.totalorder %v253, 0
      %v262 = vsub.s32 0, %v253
      %v263 = vsel %vm261, %v262, %v253
      %v264 = vshrl.u32 %v263, 4
      %v265 = vand.u32 %v263, 15
      %v266 = vsub.s32 0, %v265
      %v267 = vsel %vm261, %v266, %v265
      %vm268 = vcmp.ne.s32.totalorder %v260, 0
      %vm269 = vcmp.ne.s32.totalorder %v267, 0
      %vm270 = vcmp.lt.s32.totalorder %v260, 0
      %vm271 = vcmp.lt.s32.totalorder %v267, 0
      %vm272 = vmand %vm270, %vm268
      %vm273 = vmand %vm271, %vm269
      %v274 = vadd.s32 %v260, 16
      %v275 = vadd.s32 %v267, 16
      %v276 = vsel %vm272, %v274, %v260
      %v277 = vsel %vm273, %v275, %v267
      %vm278 = vcmp.ge.s32.totalorder %v276, 1
      %vm279 = vcmp.ge.s32.totalorder %v277, 1
      %vm280 = vmpackc.low %vm279, %vm278
      %v281 = vsel %vm280, 65537, 0
      %v282 = vlaneseq
      %v283 = vshrl.u32 %v282, 7
      %v284 = vsub.s32 0, %v283
      %v285 = vrot.slane %v281, %v284
      %v286 = vlaneseq
      %v287 = vshrl.u32 %v286, 7
      %v288 = vsub.s32 4, %v287
      %v289 = vrot.slane %v281, %v288
      %vm290 = vcmp.ne.s16.totalorder %v285, 0
      %vm291 = vcmp.ne.s16.totalorder %v289, 0
      %v292 = vsel %vm290, %v246, 0
      %v293 = vsel %vm291, %v241, 0
      %vm294 = vcmp.le.s32.totalorder %v276, 14
      %vm295 = vcmp.le.s32.totalorder %v277, 14
      %vm296 = vmpackc.low %vm295, %vm294
      %v297 = vsel %vm296, 65537, 0
      %v298 = vlaneseq
      %v299 = vshrl.u32 %v298, 7
      %v300 = vsub.s32 0, %v299
      %v301 = vrot.slane %v297, %v300
      %v302 = vlaneseq
      %v303 = vshrl.u32 %v302, 7
      %v304 = vsub.s32 4, %v303
      %v305 = vrot.slane %v297, %v304
      %306 = vrot.lane.b32.xlu0 %v301, 2
      %v307 = vpop.permute.xlu0 %306
      %308 = vrot.lane.b32.xlu0 %v305, 2
      %v309 = vpop.permute.xlu0 %308
      %vm310 = vcmask 15360
      %v311 = vsel %vm310, %v307, %v309
      %vm312 = vcmp.ne.s16.totalorder %v307, 0
      %vm313 = vcmp.ne.s16.totalorder %v311, 0
      %vm314 = vcmp.ne.s16.totalorder %v309, 0
      %v315 = vsel %vm312, %v246, 0
      %v316 = vsel %vm313, %v241, 0
      %v317 = vsel %vm314, %v249, 0
      %318 = vrot.lane.b32.xlu0 %v285, 16
      %v319 = vpop.permute.xlu0 %318
      %320 = vrot.lane.b32.xlu0 %v289, 16
      %v321 = vpop.permute.xlu0 %320
      %vm322 = vcmask 130048
      %v323 = vsel %vm322, %v319, %v321
      %vm324 = vcmp.ne.s16.totalorder %v319, 0
      %vm325 = vcmp.ne.s16.totalorder %v323, 0
      %vm326 = vcmp.ne.s16.totalorder %v321, 0
      %v327 = vsel %vm324, %v246, 0
      %v328 = vsel %vm325, %v241, 0
      %v329 = vsel %vm326, %v249, 0
      %330 = vrot.lane.b32.xlu0 %v301, 18
      %v331 = vpop.permute.xlu0 %330
      %332 = vrot.lane.b32.xlu0 %v305, 18
      %v333 = vpop.permute.xlu0 %332
      %vm334 = vcmask 146432
      %v335 = vsel %vm334, %v331, %v333
      %vm336 = vcmp.ne.s16.totalorder %v331, 0
      %vm337 = vcmp.ne.s16.totalorder %v335, 0
      %vm338 = vcmp.ne.s16.totalorder %v333, 0
      %v339 = vsel %vm336, %v246, 0
      %v340 = vsel %vm337, %v241, 0
      %v341 = vsel %vm338, %v249, 0
      %342 = vrot.lane.b32.xlu0 %v285, 32
      %v343 = vpop.permute.xlu0 %342
      %344 = vrot.lane.b32.xlu0 %v289, 32
      %v345 = vpop.permute.xlu0 %344
      %vm346 = vcmask 261120
      %v347 = vsel %vm346, %v343, %v345
      %vm348 = vcmp.ne.s16.totalorder %v343, 0
      %vm349 = vcmp.ne.s16.totalorder %v347, 0
      %vm350 = vcmp.ne.s16.totalorder %v345, 0
      %v351 = vsel %vm348, %v246, 0
      %v352 = vsel %vm349, %v241, 0
      %v353 = vsel %vm350, %v249, 0
      %354 = vrot.lane.b32.xlu0 %v301, 34
      %v355 = vpop.permute.xlu0 %354
      %356 = vrot.lane.b32.xlu0 %v305, 34
      %v357 = vpop.permute.xlu0 %356
      %vm358 = vcmask 277504
      %v359 = vsel %vm358, %v355, %v357
      %vm360 = vcmp.ne.s16.totalorder %v355, 0
      %vm361 = vcmp.ne.s16.totalorder %v359, 0
      %vm362 = vcmp.ne.s16.totalorder %v357, 0
      %v363 = vsel %vm360, %v246, 0
      %v364 = vsel %vm361, %v241, 0
      %v365 = vsel %vm362, %v249, 0
      %v368 = vrot.slane %v246, 6
      %v369 = vrot.slane %v241, 6
      %v370 = vrot.slane %v249, 6
      %371 = vrot.lane.b32.xlu0 %v368, 127
      %v372 = vpop.permute.xlu0 %371
      %373 = vrot.lane.b32.xlu0 %v369, 127
      %v374 = vpop.permute.xlu0 %373
      %375 = vrot.lane.b32.xlu0 %v370, 127
      %v376 = vpop.permute.xlu0 %375
      %vm377 = vcmask 1039360
      %v378 = vsel %vm377, %v372, %v374
      %v379 = vsel %vm377, %v374, %v376
      %v383 = vrot.slane %v315, 4
      %v384 = vrot.slane %v316, 4
      %v385 = vrot.slane %v317, 4
      %386 = vrot.lane.b32.xlu0 %v383, 126
      %v387 = vpop.permute.xlu0 %386
      %388 = vrot.lane.b32.xlu0 %v384, 126
      %v389 = vpop.permute.xlu0 %388
      %390 = vrot.lane.b32.xlu0 %v385, 126
      %v391 = vpop.permute.xlu0 %390
      %vm392 = vcmask 1031168
      %v393 = vsel %vm392, %v387, %v389
      %v394 = vsel %vm392, %v389, %v391
      %v398 = vrot.slane %v327, 2
      %v399 = vrot.slane %v328, 2
      %v400 = vrot.slane %v329, 2
      %401 = vrot.lane.b32.xlu0 %v398, 112
      %v402 = vpop.permute.xlu0 %401
      %403 = vrot.lane.b32.xlu0 %v399, 112
      %v404 = vpop.permute.xlu0 %403
      %405 = vrot.lane.b32.xlu0 %v400, 112
      %v406 = vpop.permute.xlu0 %405
      %vm407 = vcmask 916480
      %v408 = vsel %vm407, %v402, %v404
      %v409 = vsel %vm407, %v404, %v406
      %410 = vrot.lane.b32.xlu0 %v246, 111
      %v411 = vpop.permute.xlu0 %410
      %412 = vrot.lane.b32.xlu0 %v241, 111
      %v413 = vpop.permute.xlu0 %412
      %414 = vrot.lane.b32.xlu0 %v249, 111
      %v415 = vpop.permute.xlu0 %414
      %vm416 = vcmask 908288
      %v417 = vsel %vm416, %v411, %v413
      %v418 = vsel %vm416, %v413, %v415
      %v422 = vrot.slane %v339, 6
      %v423 = vrot.slane %v340, 6
      %v424 = vrot.slane %v341, 6
      %425 = vrot.lane.b32.xlu0 %v422, 110
      %v426 = vpop.permute.xlu0 %425
      %427 = vrot.lane.b32.xlu0 %v423, 110
      %v428 = vpop.permute.xlu0 %427
      %429 = vrot.lane.b32.xlu0 %v424, 110
      %v430 = vpop.permute.xlu0 %429
      %vm431 = vcmask 900096
      %v432 = vsel %vm431, %v426, %v428
      %v433 = vsel %vm431, %v428, %v430
      %v437 = vrot.slane %v351, 4
      %v438 = vrot.slane %v352, 4
      %v439 = vrot.slane %v353, 4
      %440 = vrot.lane.b32.xlu0 %v437, 96
      %v441 = vpop.permute.xlu0 %440
      %442 = vrot.lane.b32.xlu0 %v438, 96
      %v443 = vpop.permute.xlu0 %442
      %444 = vrot.lane.b32.xlu0 %v439, 96
      %v445 = vpop.permute.xlu0 %444
      %vm446 = vcmask 785408
      %v447 = vsel %vm446, %v441, %v443
      %v448 = vsel %vm446, %v443, %v445
      %v449 = vrot.slane %v246, 2
      %v450 = vrot.slane %v241, 2
      %v451 = vrot.slane %v249, 2
      %452 = vrot.lane.b32.xlu0 %v449, 95
      %v453 = vpop.permute.xlu0 %452
      %454 = vrot.lane.b32.xlu0 %v450, 95
      %v455 = vpop.permute.xlu0 %454
      %456 = vrot.lane.b32.xlu0 %v451, 95
      %v457 = vpop.permute.xlu0 %456
      %vm458 = vcmask 777216
      %v459 = vsel %vm458, %v453, %v455
      %v460 = vsel %vm458, %v455, %v457
      %464 = vrot.lane.b32.xlu0 %v363, 94
      %v465 = vpop.permute.xlu0 %464
      %466 = vrot.lane.b32.xlu0 %v364, 94
      %v467 = vpop.permute.xlu0 %466
      %468 = vrot.lane.b32.xlu0 %v365, 94
      %v469 = vpop.permute.xlu0 %468
      %vm470 = vcmask 769024
      %v471 = vsel %vm470, %v465, %v467
      %v472 = vsel %vm470, %v467, %v469
      %vm473 = vcmask 1041408
      %v476 = vsel %vm473, %v292, %v378
      %v479 = vsel %vm473, %v293, %v379
      %vm480 = vcmask 1043456
      %v482 = vsel %vm480, %v476, %v393
      %v484 = vsel %vm480, %v479, %v394
      %vm485 = vcmask 1045504
      %v487 = vsel %vm485, %v482, %v408
      %v490 = vsel %vm485, %v484, %v409
      %v494 = vsel %vm473, %v417, %v432
      %v497 = vsel %vm473, %v418, %v433
      %v499 = vsel %vm480, %v494, %v447
      %v501 = vsel %vm480, %v497, %v448
      %v503 = vsel %vm485, %v499, %v459
      %v506 = vsel %vm485, %v501, %v460
      %v508 = vld [vmem:[%s1] sm:$0x3]
      %v509 = vld [vmem:[%s2] sm:$0xf]
      %511 = vset.pattern.permute.xlu0 0
      %512 = vperm.xlu0 %511, %v509
      %v513 = vpop.permute.xlu0 %512
      %vm515 = vcmask 293888
      %v517 = vsel %vm515, %v508, 0
      %v520 = vsel %vm473, %v471, 0
      %v523 = vsel %vm473, %v472, 0
      %525 = vmatprep.subr.bf16.mxu0 %v490
      %526 = vmatpush1.bf16.msra.mxu0 %v487
      %527 = vmatprep.subr.bf16.mxu0 %v506
      %528 = vmatpush1.bf16.msra.mxu0 %v503
      %529 = vmatprep.subr.bf16.mxu0 %v523
      %530 = vmatpush1.bf16.msra.mxu0 %v520
      %531 = vmatprep.subr.bf16.mxu0 0
      %532 = vmatpush1.bf16.msra.mxu0 0
      %533 = vmatprep.subr.bf16.mxu0 0
      %534 = vmatpush1.bf16.msra.mxu0 0
      %535 = vmatprep.subr.bf16.mxu0 0
      %536 = vmatpush1.bf16.msra.mxu0 0
      %537 = vmatprep.subr.bf16.mxu0 0
      %538 = vmatpush1.bf16.msra.mxu0 0
      %539 = vmatprep.subr.bf16.mxu0 0
      %540 = vmatpush1.bf16.msra.mxu0 0
      %541 = vmatprep.subr.bf16.mxu0 0
      %542 = vmatpush1.bf16.msra.mxu0 0
      %543 = vmatprep.subr.bf16.mxu0 0
      %544 = vmatpush1.bf16.msra.mxu0 0
      %545 = vmatprep.subr.bf16.mxu0 0
      %546 = vmatpush1.bf16.msra.mxu0 0
      %547 = vmatprep.subr.bf16.mxu0 0
      %548 = vmatpush1.bf16.msra.mxu0 0
      %549 = vmatprep.subr.bf16.mxu0 0
      %550 = vmatpush1.bf16.msra.mxu0 0
      %551 = vmatprep.subr.bf16.mxu0 0
      %552 = vmatpush1.bf16.msra.mxu0 0
      %553 = vmatprep.subr.bf16.mxu0 0
      %554 = vmatpush1.bf16.msra.mxu0 0
      %555 = vmatprep.subr.bf16.mxu0 0
      %556 = vmatpush1.bf16.msra.mxu0 0
      %557 = vmatprep.mubr.bf16.mxu0 0
      %558 = vmatmul.mubr.bf16.gmra.mrb[0].mxu0 %v517
      %v559 = vpop.f32.mrb[0].mxu0
      %v560 = vadd.f32 %v513, %v559
      %v561 = vpop.f32.mrb[0].mxu0
      %v562 = vadd.f32 %v513, %v561
      %v563 = vpop.f32.mrb[0].mxu0
      %v564 = vpop.f32.mrb[0].mxu0
      %565 = vdwg.mxu0
      %v566 = vmax.f32 %v560, 0.0
      %v567 = vmax.f32 %v562, 0.0
      %v568 = vpack.c.bf16 %v566, %v566
      %v569 = vpack.c.bf16 %v567, %v567
      %572 = vrot.lane.b32.xlu0 %v568, 17
      %v573 = vpop.permute.xlu0 %572
      %574 = vrot.lane.b32.xlu0 %v569, 17
      %v575 = vpop.permute.xlu0 %574
      %v576 = vsel %vm240, %v573, %v575
      %v579 = vsel %vm243, 0, %v573
      %v582 = vsel %vm243, %v575, 0
      %v584 = vsel %vm290, %v579, 0
      %v585 = vsel %vm291, %v576, 0
      %v586 = vsel %vm312, %v579, 0
      %v587 = vsel %vm313, %v576, 0
      %v588 = vsel %vm314, %v582, 0
      %v589 = vsel %vm324, %v579, 0
      %v590 = vsel %vm325, %v576, 0
      %v591 = vsel %vm326, %v582, 0
      %v592 = vsel %vm336, %v579, 0
      %v593 = vsel %vm337, %v576, 0
      %v594 = vsel %vm338, %v582, 0
      %v595 = vsel %vm348, %v579, 0
      %v596 = vsel %vm349, %v576, 0
      %v597 = vsel %vm350, %v582, 0
      %v598 = vsel %vm360, %v579, 0
      %v599 = vsel %vm361, %v576, 0
      %v600 = vsel %vm362, %v582, 0
      %v603 = vrot.slane %v579, 6
      %v604 = vrot.slane %v576, 6
      %v605 = vrot.slane %v582, 6
      %606 = vrot.lane.b32.xlu0 %v603, 127
      %v607 = vpop.permute.xlu0 %606
      %608 = vrot.lane.b32.xlu0 %v604, 127
      %v609 = vpop.permute.xlu0 %608
      %610 = vrot.lane.b32.xlu0 %v605, 127
      %v611 = vpop.permute.xlu0 %610
      %v612 = vsel %vm377, %v607, %v609
      %v613 = vsel %vm377, %v609, %v611
      %v617 = vrot.slane %v586, 4
      %v618 = vrot.slane %v587, 4
      %v619 = vrot.slane %v588, 4
      %620 = vrot.lane.b32.xlu0 %v617, 126
      %v621 = vpop.permute.xlu0 %620
      %622 = vrot.lane.b32.xlu0 %v618, 126
      %v623 = vpop.permute.xlu0 %622
      %624 = vrot.lane.b32.xlu0 %v619, 126
      %v625 = vpop.permute.xlu0 %624
      %v626 = vsel %vm392, %v621, %v623
      %v627 = vsel %vm392, %v623, %v625
      %v631 = vrot.slane %v589, 2
      %v632 = vrot.slane %v590, 2
      %v633 = vrot.slane %v591, 2
      %634 = vrot.lane.b32.xlu0 %v631, 112
      %v635 = vpop.permute.xlu0 %634
      %636 = vrot.lane.b32.xlu0 %v632, 112
      %v637 = vpop.permute.xlu0 %636
      %638 = vrot.lane.b32.xlu0 %v633, 112
      %v639 = vpop.permute.xlu0 %638
      %v640 = vsel %vm407, %v635, %v637
      %v641 = vsel %vm407, %v637, %v639
      %642 = vrot.lane.b32.xlu0 %v579, 111
      %v643 = vpop.permute.xlu0 %642
      %644 = vrot.lane.b32.xlu0 %v576, 111
      %v645 = vpop.permute.xlu0 %644
      %646 = vrot.lane.b32.xlu0 %v582, 111
      %v647 = vpop.permute.xlu0 %646
      %v648 = vsel %vm416, %v643, %v645
      %v649 = vsel %vm416, %v645, %v647
      %v653 = vrot.slane %v592, 6
      %v654 = vrot.slane %v593, 6
      %v655 = vrot.slane %v594, 6
      %656 = vrot.lane.b32.xlu0 %v653, 110
      %v657 = vpop.permute.xlu0 %656
      %658 = vrot.lane.b32.xlu0 %v654, 110
      %v659 = vpop.permute.xlu0 %658
      %660 = vrot.lane.b32.xlu0 %v655, 110
      %v661 = vpop.permute.xlu0 %660
      %v662 = vsel %vm431, %v657, %v659
      %v663 = vsel %vm431, %v659, %v661
      %v667 = vrot.slane %v595, 4
      %v668 = vrot.slane %v596, 4
      %v669 = vrot.slane %v597, 4
      %670 = vrot.lane.b32.xlu0 %v667, 96
      %v671 = vpop.permute.xlu0 %670
      %672 = vrot.lane.b32.xlu0 %v668, 96
      %v673 = vpop.permute.xlu0 %672
      %674 = vrot.lane.b32.xlu0 %v669, 96
      %v675 = vpop.permute.xlu0 %674
      %v676 = vsel %vm446, %v671, %v673
      %v677 = vsel %vm446, %v673, %v675
      %v678 = vrot.slane %v579, 2
      %v679 = vrot.slane %v576, 2
      %v680 = vrot.slane %v582, 2
      %681 = vrot.lane.b32.xlu0 %v678, 95
      %v682 = vpop.permute.xlu0 %681
      %683 = vrot.lane.b32.xlu0 %v679, 95
      %v684 = vpop.permute.xlu0 %683
      %685 = vrot.lane.b32.xlu0 %v680, 95
      %v686 = vpop.permute.xlu0 %685
      %v687 = vsel %vm458, %v682, %v684
      %v688 = vsel %vm458, %v684, %v686
      %692 = vrot.lane.b32.xlu0 %v598, 94
      %v693 = vpop.permute.xlu0 %692
      %694 = vrot.lane.b32.xlu0 %v599, 94
      %v695 = vpop.permute.xlu0 %694
      %696 = vrot.lane.b32.xlu0 %v600, 94
      %v697 = vpop.permute.xlu0 %696
      %v698 = vsel %vm470, %v693, %v695
      %v699 = vsel %vm470, %v695, %v697
      %v702 = vsel %vm473, %v584, %v612
      %v705 = vsel %vm473, %v585, %v613
      %v707 = vsel %vm480, %v702, %v626
      %v709 = vsel %vm480, %v705, %v627
      %v711 = vsel %vm485, %v707, %v640
      %v714 = vsel %vm485, %v709, %v641
      %v718 = vsel %vm473, %v648, %v662
      %v721 = vsel %vm473, %v649, %v663
      %v723 = vsel %vm480, %v718, %v676
      %v725 = vsel %vm480, %v721, %v677
      %v727 = vsel %vm485, %v723, %v687
      %v730 = vsel %vm485, %v725, %v688
      %v732 = vld [vmem:[%s3] sm:$0x3]
      %v733 = vld [vmem:[%s4] sm:$0xf]
      %735 = vset.pattern.permute.xlu0 0
      %736 = vperm.xlu0 %735, %v733
      %v737 = vpop.permute.xlu0 %736
      %v740 = vsel %vm515, %v732, 0
      %v743 = vsel %vm473, %v698, 0
      %v746 = vsel %vm473, %v699, 0
      %748 = vmatprep.subr.bf16.mxu0 %v714
      %749 = vmatpush1.bf16.msra.mxu0 %v711
      %750 = vmatprep.subr.bf16.mxu0 %v730
      %751 = vmatpush1.bf16.msra.mxu0 %v727
      %752 = vmatprep.subr.bf16.mxu0 %v746
      %753 = vmatpush1.bf16.msra.mxu0 %v743
      %754 = vmatprep.subr.bf16.mxu0 0
      %755 = vmatpush1.bf16.msra.mxu0 0
      %756 = vmatprep.subr.bf16.mxu0 0
      %757 = vmatpush1.bf16.msra.mxu0 0
      %758 = vmatprep.subr.bf16.mxu0 0
      %759 = vmatpush1.bf16.msra.mxu0 0
      %760 = vmatprep.subr.bf16.mxu0 0
      %761 = vmatpush1.bf16.msra.mxu0 0
      %762 = vmatprep.subr.bf16.mxu0 0
      %763 = vmatpush1.bf16.msra.mxu0 0
      %764 = vmatprep.subr.bf16.mxu0 0
      %765 = vmatpush1.bf16.msra.mxu0 0
      %766 = vmatprep.subr.bf16.mxu0 0
      %767 = vmatpush1.bf16.msra.mxu0 0
      %768 = vmatprep.subr.bf16.mxu0 0
      %769 = vmatpush1.bf16.msra.mxu0 0
      %770 = vmatprep.subr.bf16.mxu0 0
      %771 = vmatpush1.bf16.msra.mxu0 0
      %772 = vmatprep.subr.bf16.mxu0 0
      %773 = vmatpush1.bf16.msra.mxu0 0
      %774 = vmatprep.subr.bf16.mxu0 0
      %775 = vmatpush1.bf16.msra.mxu0 0
      %776 = vmatprep.subr.bf16.mxu0 0
      %777 = vmatpush1.bf16.msra.mxu0 0
      %778 = vmatprep.subr.bf16.mxu0 0
      %779 = vmatpush1.bf16.msra.mxu0 0
      %780 = vmatprep.mubr.bf16.mxu0 0
      %781 = vmatmul.mubr.bf16.gmra.mrb[0].mxu0 %v740
      %v782 = vpop.f32.mrb[0].mxu0
      %v783 = vadd.f32 %v737, %v782
      %v784 = vpop.f32.mrb[0].mxu0
      %v785 = vadd.f32 %v737, %v784
      %v786 = vpop.f32.mrb[0].mxu0
      %v787 = vpop.f32.mrb[0].mxu0
      %788 = vdwg.mxu0
      %v789 = vadd.f32 %v783, %v228
      %v790 = vadd.f32 %v785, %v230
      %v791 = vmax.f32 %v789, 0.0
      %v792 = vmax.f32 %v790, 0.0
      %v795 = vcombine.low %v791, %v792
      %797 = vst [vmem:[%s224] sm:$0xff] %v795
      %p798 = scmp.lt.s32.totalorder %s16, 1
      %s799 = scalar_select %p798, %s16, 1
      %s800 = smul.addr %s799, 2
      %s801 = smul.addr %s800, 4
      %s802 = scalar_lea.vmem %s5, %s801
      // Predicated region
      $region41: #{residual_block_forward.1} parent=39 // pred_check
        %p803 = pneg %p144
      $region42: #{residual_block_forward.1} parent=39 // pred_check_branch
        %805 = sbr.rel (%p803) target = $region44
      $region43: #{residual_block_forward.1} parent=39 // pred_region
        _
      $region44: #{residual_block_forward.1} parent=39 // pred_fallthru
        _
    $region40: #{residual_block_forward.1} parent=5 // pred_fallthru
      _
    %p806 = scmp.le.s32.totalorder 2, %s11
    // Predicated region
    $region45: #{residual_block_forward.1} parent=5 // pred_check
      %p807 = pneg %p806
    $region46: #{residual_block_forward.1} parent=5 // pred_check_branch
      %809 = sbr.rel (%p807) target = $region48
    $region47: #{residual_block_forward.1} parent=5 // pred_region
      %s810 = ssub.s32 %s11, 2
      // Predicated region
      $region49: #{residual_block_forward.1} parent=47 // pred_check
        %p811 = pneg %p150
      $region50: #{residual_block_forward.1} parent=47 // pred_check_branch
        %813 = sbr.rel (%p811) target = $region52
      $region51: #{residual_block_forward.1} parent=47 // pred_region
        %p814 = scmp.lt.s32.totalorder %s17, 1
        %s815 = scalar_select %p814, %s17, 1
        %s816 = smul.addr %s815, 2
        %s817 = smul.addr %s816, 4
        %s818 = scalar_lea.vmem %s5, %s817
      $region52: #{residual_block_forward.1} parent=47 // pred_fallthru
        _
    $region48: #{residual_block_forward.1} parent=5 // pred_fallthru
      _
  $region6: #{residual_block_forward.1} parent=0 // loop_footer
    %s15 = sadd.s32 1, %s11
  $region7: #{residual_block_forward.1} parent=0 // loop_footer_branch
    %10 = sbr.rel target = $region3
  $region8: #{residual_block_forward.1} parent=0 // loop_exit
    _

</llo_original>
